<compile_context>
chip_gen: v5e
topology: v5e:2x2
jax: 0.10.0
libtpu: 0.0.40
codegen_flags: <defaults>
</compile_context>

<pallas_src>
import math

import jax
import jax.numpy as jnp
from jax.experimental import pallas as pl
from jax.experimental.pallas import tpu as pltpu


def _predictor_head_kernel(x_ref, w_ref, b_ref, out_ref):
    # x_ref: (tile, D) bf16   w_ref: (D, V) bf16
    # b_ref: (1, V) f32       out_ref: (tile, V)
    logits = jnp.dot(
        x_ref[...], w_ref[...],
        preferred_element_type=jnp.float32,     # single bf16 MXU pass, f32 acc
    )
    logits = logits + b_ref[...]                # broadcast (1, V) -> (tile, V)

    # Numerically-stable log_softmax along the vocab (lane) axis.
    m = jnp.max(logits, axis=-1, keepdims=True)                      # XLU reduce
    shifted = logits - m
    lse = jnp.log(jnp.sum(jnp.exp(shifted), axis=-1, keepdims=True))  # EUP
    out_ref[...] = (shifted - lse).astype(out_ref.dtype)


def predictor_head_forward(x, w_t, b, *, tile_m=256, out_dtype=jnp.float32):
    """x: [..., D]; w_t: [D, V] (= proj.weight.T); b: [V].

    Returns log_softmax(x @ w_t + b, axis=-1) with shape [..., V], in
    `out_dtype` (f32 default; pass jnp.bfloat16 to halve output writeback).
    """
    *lead, D = x.shape
    V = w_t.shape[1]
    N = 1
    for d in lead:
        N *= d

    x2 = x.reshape(N, D).astype(jnp.bfloat16)   # bf16 activations for the MXU
    w2 = w_t.astype(jnp.bfloat16)               # bf16 resident weight
    b2 = b.reshape(1, V).astype(jnp.float32)    # bias added in f32

    # Row tile: big for MXU/pipeline efficiency, shrink (multiple of 8 sublanes)
    # for tiny N, and cap so the row grid has >= 2 steps when possible so both
    # v7x TensorCores get work under dimension_semantics="parallel".
    tile_m = min(int(tile_m), pl.cdiv(N, 8) * 8)
    if N > 8:
        tile_m = min(tile_m, max(8, pl.cdiv(N, 16) * 8))
    tile_m = max(8, tile_m)
    grid_m = pl.cdiv(N, tile_m)                 # ragged last block: no pad/slice

    out_itemsize = jnp.dtype(out_dtype).itemsize
    # Resident W/b (double-buffer worst case) + double-buffered x/out tiles,
    # with 2x headroom; keep within the most constrained (v7x 64 MiB) budget.
    vmem_needed = 2 * (D * V * 2 + V * 4 + tile_m * D * 2 + tile_m * V * out_itemsize)
    vmem_limit = int(min(max(2 * vmem_needed, 32 << 20), 100 << 20))

    out_flat = pl.pallas_call(
        _predictor_head_kernel,
        out_shape=jax.ShapeDtypeStruct((N, V), out_dtype),
        grid_spec=pltpu.PrefetchScalarGridSpec(
            num_scalar_prefetch=0,
            grid=(grid_m,),
            in_specs=[
                pl.BlockSpec((tile_m, D), lambda i: (i, 0)),  # activation tile
                pl.BlockSpec((D, V), lambda i: (0, 0)),       # weight, VMEM-resident
                pl.BlockSpec((1, V), lambda i: (0, 0)),       # bias, VMEM-resident
            ],
            out_specs=pl.BlockSpec((tile_m, V), lambda i: (i, 0)),
        ),
        compiler_params=pltpu.CompilerParams(
            dimension_semantics=("parallel",),
            vmem_limit_bytes=vmem_limit),
    )(x2, w2, b2)

    return out_flat.reshape(*lead, V)


if __name__ == "__main__":
    # Small shapes consistent with the module: batch=2, seq=8, d_model=32,
    # vocab=128 (vocab chosen lane-dense, i.e. a multiple of 128).
    B, S, D, V = 2, 8, 32, 128

    key = jax.random.PRNGKey(0)
    kx, kw, kb = jax.random.split(key, 3)

    x = jax.random.normal(kx, (B, S, D), dtype=jnp.float32)
    # nn.Linear(D, V) default init: U(-1/sqrt(D), 1/sqrt(D)) for weight & bias.
    bound = 1.0 / math.sqrt(D)
    w_t = jax.random.uniform(kw, (D, V), dtype=jnp.float32,
                             minval=-bound, maxval=bound)   # = weight.T
    b = jax.random.uniform(kb, (V,), dtype=jnp.float32,
                           minval=-bound, maxval=bound)

    out = predictor_head_forward(x, w_t, b)
    out = jax.block_until_ready(out)

    # Reference: plain JAX linear + log_softmax with matching (bf16 in, f32
    # acc) matmul precision.  Tolerance relaxed for the bf16 MXU pass.
    logits_ref = jnp.dot(x.astype(jnp.bfloat16), w_t.astype(jnp.bfloat16),
                         preferred_element_type=jnp.float32) + b
    ref = jax.nn.log_softmax(logits_ref, axis=-1)

    assert out.shape == (B, S, V)
    assert jnp.allclose(out, ref, atol=2e-2, rtol=2e-2), \
        float(jnp.max(jnp.abs(out - ref)))

    print("KERNEL_OK")
</pallas_src>

<mosaic_0001>
module attributes {stable_mosaic.version = 11 : i64} {
  func.func @_predictor_head_kernel(%arg0: i32, %arg1: memref<8x32xbf16, #tpu.memory_space<vmem>>, %arg2: memref<32x128xbf16, #tpu.memory_space<vmem>>, %arg3: memref<1x128xf32, #tpu.memory_space<vmem>>, %arg4: memref<8x128xf32, #tpu.memory_space<vmem>>) attributes {dimension_semantics = [#tpu.dimension_semantics<parallel>], iteration_bounds = array<i64: 2>, scalar_prefetch = 0 : i64, scratch_operands = 0 : i64, tpu.core_type = #tpu.core_type<tc>, window_params = [{transform_indices = @transform_0, window_bounds = array<i64: 8, 32>}, {pipeline_mode = #tpu.pipeline_mode<synchronous>, transform_indices = @transform_1, window_bounds = array<i64: 32, 128>}, {pipeline_mode = #tpu.pipeline_mode<synchronous>, transform_indices = @transform_2, window_bounds = array<i64: 1, 128>}, {transform_indices = @transform_3, window_bounds = array<i64: 8, 128>}]} {
    %c0 = arith.constant 0 : index
    %c0_0 = arith.constant 0 : index
    %0 = vector.load %arg1[%c0, %c0_0] : memref<8x32xbf16, #tpu.memory_space<vmem>>, vector<8x32xbf16>
    %c0_1 = arith.constant 0 : index
    %c0_2 = arith.constant 0 : index
    %1 = vector.load %arg2[%c0_1, %c0_2] : memref<32x128xbf16, #tpu.memory_space<vmem>>, vector<32x128xbf16>
    %cst = arith.constant dense<0.000000e+00> : vector<8x128xf32>
    %2 = tpu.matmul %0, %1, %cst {dimension_numbers = #tpu.dot_dimension_numbers<[1], [0], [0], [1], [0, 0, 1, 1], [], []>} : vector<8x32xbf16>, vector<32x128xbf16>, vector<8x128xf32> -> vector<8x128xf32>
    %c0_3 = arith.constant 0 : index
    %c0_4 = arith.constant 0 : index
    %3 = vector.load %arg3[%c0_3, %c0_4] : memref<1x128xf32, #tpu.memory_space<vmem>>, vector<1x128xf32>
    %4 = vector.broadcast %3 : vector<1x128xf32> to vector<8x128xf32>
    %5 = arith.addf %2, %4 : vector<8x128xf32>
    %cst_5 = arith.constant dense<0xFF800000> : vector<8xf32>
    %6 = vector.multi_reduction <maximumf>, %5, %cst_5 [1] : vector<8x128xf32> to vector<8xf32>
    %7 = vector.shape_cast %6 : vector<8xf32> to vector<8x1xf32>
    %8 = vector.broadcast %7 : vector<8x1xf32> to vector<8x128xf32>
    %9 = arith.subf %5, %8 : vector<8x128xf32>
    %10 = math.exp %9 : vector<8x128xf32>
    %cst_6 = arith.constant dense<0.000000e+00> : vector<8xf32>
    %11 = vector.multi_reduction <add>, %10, %cst_6 [1] : vector<8x128xf32> to vector<8xf32>
    %12 = vector.shape_cast %11 : vector<8xf32> to vector<8x1xf32>
    %13 = math.log %12 : vector<8x1xf32>
    %14 = vector.broadcast %13 : vector<8x1xf32> to vector<8x128xf32>
    %15 = arith.subf %9, %14 : vector<8x128xf32>
    %c0_7 = arith.constant 0 : index
    %c0_8 = arith.constant 0 : index
    %16 = vector.load %arg4[%c0_7, %c0_8] : memref<8x128xf32, #tpu.memory_space<vmem>>, vector<8x128xf32>
    tpu.vector_store %arg4[%c0_7, %c0_8], %15 {strides = array<i32>} : memref<8x128xf32, #tpu.memory_space<vmem>>, vector<8x128xf32>,
    return
  }
  func.func @transform_0(%arg0: i32) -> (i32, i32) {
    %c0_i32 = arith.constant 0 : i32
    %c0_i32_0 = arith.constant 0 : i32
    return %arg0, %c0_i32 : i32, i32
  }
  func.func @transform_1(%arg0: i32) -> (i32, i32) {
    %c0_i32 = arith.constant 0 : i32
    %c0_i32_0 = arith.constant 0 : i32
    %c0_i32_1 = arith.constant 0 : i32
    return %c0_i32, %c0_i32_0 : i32, i32
  }
  func.func @transform_2(%arg0: i32) -> (i32, i32) {
    %c0_i32 = arith.constant 0 : i32
    %c0_i32_0 = arith.constant 0 : i32
    %c0_i32_1 = arith.constant 0 : i32
    return %c0_i32, %c0_i32_0 : i32, i32
  }
  func.func @transform_3(%arg0: i32) -> (i32, i32) {
    %c0_i32 = arith.constant 0 : i32
    %c0_i32_0 = arith.constant 0 : i32
    return %arg0, %c0_i32 : i32, i32
  }
}

</mosaic_0001>

<llo_original>
// kernel: tpu_custom_call.1
$region0: #{tpu_custom_call.1}
  #allocation0 [shape = 'u32[]', space=smem, size = 0x4, offset = 0x4, fixed_abs, tag = 'smem constant byte address 0x4 - core index']
  #allocation1 [shape = 'u32[72,128]{1,0:T(1,128)}', space=vmem, size = 0x9000, scoped, tag = 'internal scratch']
  %s0 = inlined_call_operand.hbm [shape: bf16[16,32], index: 0, kind: input, shape index: {}]
  %s1 = inlined_call_operand.hbm [shape: bf16[32,128], index: 1, kind: input, shape index: {}]
  %s2 = inlined_call_operand.vmem [shape: f32[1,128], index: 2, kind: input, shape index: {}]
  %s3 = inlined_call_operand.hbm [shape: f32[16,128], index: 3, kind: output, shape index: {}]
  %s4 = sld [smem:[#allocation0]]
  $region53: #{tpu_custom_call.1} parent=0
    _
  %s6 = ssub.s32 1, %s4
  %s7 = scalar_select 0, %s6, %s4
  $region1: #{tpu_custom_call.1} parent=0
    #allocation2 [shape = 'u8[4096]{0}', space=vmem, size = 0x1000, scoped, tag = 'input window, operand 0']
    #allocation3 [shape = 's32[2]{0}', space=sflag, size = 0x8, scoped, tag = 'scoped memory for tpu_custom_call.1']
    #allocation4 [shape = 's32[2]{0}', space=sflag, size = 0x8, scoped, tag = 'scoped memory for tpu_custom_call.1']
    #allocation5 [shape = 'u8[8192]{0}', space=vmem, size = 0x2000, scoped, tag = 'input window, operand 1, single buffered']
    #allocation6 [shape = 's32[1]{0}', space=sflag, size = 0x4, scoped, tag = 'scoped memory for tpu_custom_call.1']
    #allocation7 [shape = 'u8[8192]{0}', space=vmem, size = 0x2000, scoped, tag = 'output window, operand 0']
    %8 = vsyncpa [#allocation3], 0
    %s9 = scalar_lea.sflag [#allocation3], 1
    %10 = vsyncpa %s9, 0
    %11 = vsyncpa [#allocation6], 0
    %12 = vsyncpa [#allocation4], 0
    %s13 = scalar_lea.sflag [#allocation4], 1
    %14 = vsyncpa %s13, 0
    loop: start=0, step=1, limit=4
    $region2: #{tpu_custom_call.1} parent=1 // loop_pre_header
      _
    $region3: #{tpu_custom_call.1} parent=1 // loop_header
      %s16 = sphi 0, %s20
      %p17 = scmp.ge.s32.totalorder %s16, 4
      %s26 = sphi 0, %s28
      %s29 = sphi 0, %s26
      %s30 = sphi 0, %s29
      %s46 = sphi 0, %s30
      %s50 = sphi 0, %s50
      %s52 = sphi 0, %s50
      %s53 = sphi 0, %s52
      %s67 = sphi 0, %s53
      %s71 = sphi 0, %s71
      %s73 = sphi 0, %s71
      %s74 = sphi 0, %s73
      %s88 = sphi 0, %s74
      %s94 = sphi 0, %s96
      %s97 = sphi 0, %s94
      %s98 = sphi 0, %s97
      %s114 = sphi 0, %s98
    $region4: #{tpu_custom_call.1} parent=1 // loop_header_branch
      %19 = sbr.rel (%p17) target = $region8
    $region5: #{tpu_custom_call.1} parent=1 // loop_body
      %s21 = ssub.s32 %s16, 1
      %s22 = ssub.s32 %s16, 2
      %s23 = sadd.s32 %s16, 1
      %s24 = ssub.s32 %s16, %s23
      %p25 = scmp.eq.s32.totalorder %s24, 0
      %s27 = sadd.s32 %s26, 1
      %s28 = scalar_select %p25, %s26, %s27
      %p31 = pneg %p25
      %p32 = scmp.eq.s32.totalorder %s16, 1
      %p33 = por %p31, %p32
      %p34 = scmp.ne.s32.totalorder %s26, %s29
      %p35 = scmp.eq.s32.totalorder %s16, 0
      %p36 = por %p34, %p35
      %p37 = scmp.ne.s32.totalorder %s26, %s29
      %p38 = scmp.eq.s32.totalorder %s21, 1
      %p39 = por %p37, %p38
      %p40 = scmp.ne.s32.totalorder %s29, %s30
      %p41 = scmp.eq.s32.totalorder %s21, 0
      %p42 = por %p40, %p41
      %p43 = scmp.ne.s32.totalorder %s29, %s30
      %p44 = scmp.eq.s32.totalorder %s22, 1
      %p45 = por %p43, %p44
      %p47 = scmp.ne.s32.totalorder %s30, %s46
      %p48 = scmp.eq.s32.totalorder %s22, 0
      %p49 = por %p47, %p48
      %s51 = sadd.s32 %s50, 1
      %p54 = scmp.eq.s32.totalorder %s16, 1
      %p55 = scmp.ne.s32.totalorder %s50, %s52
      %p56 = scmp.eq.s32.totalorder %s16, 0
      %p57 = por %p55, %p56
      %p58 = scmp.ne.s32.totalorder %s50, %s52
      %p59 = scmp.eq.s32.totalorder %s21, 1
      %p60 = por %p58, %p59
      %p61 = scmp.ne.s32.totalorder %s52, %s53
      %p62 = scmp.eq.s32.totalorder %s21, 0
      %p63 = por %p61, %p62
      %p64 = scmp.ne.s32.totalorder %s52, %s53
      %p65 = scmp.eq.s32.totalorder %s22, 1
      %p66 = por %p64, %p65
      %p68 = scmp.ne.s32.totalorder %s53, %s67
      %p69 = scmp.eq.s32.totalorder %s22, 0
      %p70 = por %p68, %p69
      %s72 = sadd.s32 %s71, 1
      %p75 = scmp.eq.s32.totalorder %s16, 1
      %p76 = scmp.ne.s32.totalorder %s71, %s73
      %p77 = scmp.eq.s32.totalorder %s16, 0
      %p78 = por %p76, %p77
      %p79 = scmp.ne.s32.totalorder %s71, %s73
      %p80 = scmp.eq.s32.totalorder %s21, 1
      %p81 = por %p79, %p80
      %p82 = scmp.ne.s32.totalorder %s73, %s74
      %p83 = scmp.eq.s32.totalorder %s21, 0
      %p84 = por %p82, %p83
      %p85 = scmp.ne.s32.totalorder %s73, %s74
      %p86 = scmp.eq.s32.totalorder %s22, 1
      %p87 = por %p85, %p86
      %p89 = scmp.ne.s32.totalorder %s74, %s88
      %p90 = scmp.eq.s32.totalorder %s22, 0
      %p91 = por %p89, %p90
      %s92 = ssub.s32 %s16, %s23
      %p93 = scmp.eq.s32.totalorder %s92, 0
      %s95 = sadd.s32 %s94, 1
      %s96 = scalar_select %p93, %s94, %s95
      %p99 = pneg %p93
      %p100 = scmp.eq.s32.totalorder %s16, 1
      %p101 = por %p99, %p100
      %p102 = scmp.ne.s32.totalorder %s94, %s97
      %p103 = scmp.eq.s32.totalorder %s16, 0
      %p104 = por %p102, %p103
      %p105 = scmp.ne.s32.totalorder %s94, %s97
      %p106 = scmp.eq.s32.totalorder %s21, 1
      %p107 = por %p105, %p106
      %p108 = scmp.ne.s32.totalorder %s97, %s98
      %p109 = scmp.eq.s32.totalorder %s21, 0
      %p110 = por %p108, %p109
      %p111 = scmp.ne.s32.totalorder %s97, %s98
      %p112 = scmp.eq.s32.totalorder %s22, 1
      %p113 = por %p111, %p112
      %p115 = scmp.ne.s32.totalorder %s98, %s114
      %p116 = scmp.eq.s32.totalorder %s22, 0
      %p117 = por %p115, %p116
      %p118 = scmp.le.s32.totalorder 1, %s16
      %p119 = scmp.lt.s32.totalorder %s16, 3
      %p120 = pnand %p118, %p119
      %p121 = pneg %p120
      // Predicated region
      $region9: #{tpu_custom_call.1} parent=5 // pred_check
        _
      $region10: #{tpu_custom_call.1} parent=5 // pred_check_branch
        %123 = sbr.rel (%p120) target = $region12
      $region11: #{tpu_custom_call.1} parent=5 // pred_region
        %s124 = ssub.s32 %s16, 1
        // Predicated region
        $region13: #{tpu_custom_call.1} parent=11 // pred_check
          %p125 = pneg %p63
        $region14: #{tpu_custom_call.1} parent=11 // pred_check_branch
          %127 = sbr.rel (%p125) target = $region16
        $region15: #{tpu_custom_call.1} parent=11 // pred_region
          %129 = vsyncadd [#allocation6], 0
          %s130 = sshll.u32 %s1, 4
          %s131 = int_to_ptr.hbm [resolvable:$true] %s130
          %s132 = sshll.u32 [#allocation5], 4
          %s133 = int_to_ptr.vmem [resolvable:$true] %s132
          %138 = dma.hbm_to_vmem [thread:$0]  %s131, 256, %s133, [#allocation6], 64, 64, 4
        $region16: #{tpu_custom_call.1} parent=11 // pred_fallthru
          _
        // Predicated region
        $region17: #{tpu_custom_call.1} parent=11 // pred_check
          %p139 = pneg %p84
        $region18: #{tpu_custom_call.1} parent=11 // pred_check_branch
          %141 = sbr.rel (%p139) target = $region20
        $region19: #{tpu_custom_call.1} parent=11 // pred_region
          _
        $region20: #{tpu_custom_call.1} parent=11 // pred_fallthru
          _
      $region12: #{tpu_custom_call.1} parent=5 // pred_fallthru
        _
      %p142 = scmp.lt.s32.totalorder %s16, 2
      // Predicated region
      $region21: #{tpu_custom_call.1} parent=5 // pred_check
        %p143 = pneg %p142
      $region22: #{tpu_custom_call.1} parent=5 // pred_check_branch
        %145 = sbr.rel (%p143) target = $region24
      $region23: #{tpu_custom_call.1} parent=5 // pred_region
        // Predicated region
        $region25: #{tpu_custom_call.1} parent=23 // pred_check
          %p146 = pneg %p36
        $region26: #{tpu_custom_call.1} parent=23 // pred_check_branch
          %148 = sbr.rel (%p146) target = $region28
        $region27: #{tpu_custom_call.1} parent=23 // pred_region
          %s149 = sand.u32 %s26, 1
          %s150 = scalar_lea.sflag [#allocation3], %s149
          %s151 = sand.u32 %s26, 1
          %s152 = smul.addr %s151, 4
          %s153 = scalar_lea.vmem [#allocation2], %s152
          %155 = vsyncadd %s150, 0
          %s156 = smul.addr %s16, 4
          %s157 = scalar_lea.hbm %s0, %s156
          %s159 = sshll.u32 %s157, 4
          %s160 = int_to_ptr.hbm [resolvable:$true] %s159
          %s161 = sshll.u32 %s153, 4
          %s162 = int_to_ptr.vmem [resolvable:$true] %s161
          %164 = dma.hbm_to_vmem [thread:$0]  %s160, 64, %s162, %s150
        $region28: #{tpu_custom_call.1} parent=23 // pred_fallthru
          _
      $region24: #{tpu_custom_call.1} parent=5 // pred_fallthru
        _
      %p165 = scmp.le.s32.totalorder 1, %s16
      %p166 = scmp.lt.s32.totalorder %s16, 3
      %p167 = pnand %p165, %p166
      %p168 = pneg %p167
      // Predicated region
      $region29: #{tpu_custom_call.1} parent=5 // pred_check
        _
      $region30: #{tpu_custom_call.1} parent=5 // pred_check_branch
        %170 = sbr.rel (%p167) target = $region32
      $region31: #{tpu_custom_call.1} parent=5 // pred_region
        %s171 = ssub.s32 %s16, 1
        %s172 = sand.u32 %s29, 1
        %s173 = scalar_lea.sflag [#allocation3], %s172
        %s174 = sand.u32 %s29, 1
        %s175 = smul.addr %s174, 4
        %s176 = scalar_lea.vmem [#allocation2], %s175
        // Predicated region
        $region33: #{tpu_custom_call.1} parent=31 // pred_check
          %p177 = pneg %p42
        $region34: #{tpu_custom_call.1} parent=31 // pred_check_branch
          %179 = sbr.rel (%p177) target = $region36
        $region35: #{tpu_custom_call.1} parent=31 // pred_region
          %181 = dma.done %s173, 64
        $region36: #{tpu_custom_call.1} parent=31 // pred_fallthru
          _
        // Predicated region
        $region37: #{tpu_custom_call.1} parent=31 // pred_check
          %p182 = pneg %p63
        $region38: #{tpu_custom_call.1} parent=31 // pred_check_branch
          %184 = sbr.rel (%p182) target = $region40
        $region39: #{tpu_custom_call.1} parent=31 // pred_region
          %186 = dma.done [#allocation6], 256
        $region40: #{tpu_custom_call.1} parent=31 // pred_fallthru
          _
        %s187 = sand.u32 %s29, 1
        %s188 = scalar_lea.sflag [#allocation3], %s187
        %s189 = sand.u32 %s29, 1
        %s190 = smul.addr %s189, 4
        %s191 = scalar_lea.vmem [#allocation2], %s190
        %p192 = pneg %p42
        %p193 = pneg %p39
        %p194 = pneg %p63
        %p195 = pneg %p60
        %p196 = pneg %p84
        %p197 = pneg %p81
        %p198 = pneg %p110
        %p199 = pneg %p107
        %s200 = sand.u32 %s97, 1
        %s201 = scalar_lea.sflag [#allocation4], %s200
        %s202 = sand.u32 %s97, 1
        %s203 = smul.addr %s202, 8
        %s204 = scalar_lea.vmem [#allocation7], %s203
        %v206 = vld [vmem:[%s176] sm:$0xf]
        %v207 = vld [vmem:[#allocation5] sm:$0xf]
        %v208 = vld [vmem:[#allocation5 + $0x4] sm:$0xf]
        %v209 = vld [vmem:[#allocation5 + $0x8] sm:$0xf]
        %v210 = vld [vmem:[#allocation5 + $0xc] sm:$0xf]
        %v211 = vld [vmem:[%s2] sm:$0x1]
        %v213 = vperm.slane %v211, 0
        %v219 = vunpack.c.l.b16 %v207
        %v220 = vunpack.c.l.b16 %v208
        %v221 = vunpack.c.l.b16 %v209
        %v222 = vunpack.c.l.b16 %v210
        %v223 = vpack.c.b16 %v220, %v219
        %v224 = vpack.c.b16 %v222, %v221
        %vm227 = vcmask 261120
        %v229 = vsel %vm227, %v206, 0
        %231 = vmatpush.bf16.msra.mxu0 0
        %232 = vmatpush.bf16.msra.mxu0 0
        %233 = vmatpush.bf16.msra.mxu0 0
        %234 = vmatpush.bf16.msra.mxu0 0
        %235 = vmatpush.bf16.msra.mxu0 0
        %236 = vmatpush.bf16.msra.mxu0 0
        %237 = vmatpush.bf16.msra.mxu0 %v224
        %238 = vmatpush.bf16.msra.mxu0 %v223
        %239 = vmatmul.bf16.gmra.mxu0 %v229
        %v240 = vpop.f32.mrf.mxu0
        %v241 = vadd.f32 %v213, %v240
        %v242 = vpop.f32.mrf.mxu0
        %243 = vdwg.mxu0
        %244 = vmax.xlane.f32.xlu0 %v241
        %v245 = vpop.xlane.xlu0 %244
        %v246 = vsub.f32 %v241, %v245
        %v247 = vmul.f32 %v246, 1.442695
        %v248 = vpow.pop %v247
        %249 = vadd.xlane.f32.xlu0 %v248
        %v250 = vpop.xlane.xlu0 %249
        %v251 = vlog2.pop %v250
        %v252 = vmul.f32 %v251, 0.6931472
        %v253 = vsub.f32 %v246, %v252
        %254 = vst [vmem:[%s204] sm:$0xff] %v253
        %s255 = sand.u32 %s97, 1
        %s256 = scalar_lea.sflag [#allocation4], %s255
        %s257 = sand.u32 %s97, 1
        %s258 = smul.addr %s257, 8
        %s259 = scalar_lea.vmem [#allocation7], %s258
        // Predicated region
        $region41: #{tpu_custom_call.1} parent=31 // pred_check
          %p260 = pneg %p107
        $region42: #{tpu_custom_call.1} parent=31 // pred_check_branch
          %262 = sbr.rel (%p260) target = $region44
        $region43: #{tpu_custom_call.1} parent=31 // pred_region
          %264 = vsyncadd %s256, 0
          %s265 = smul.addr %s21, 8
          %s266 = scalar_lea.hbm %s3, %s265
          %s268 = sshll.u32 %s259, 4
          %s269 = int_to_ptr.vmem [resolvable:$true] %s268
          %s270 = sshll.u32 %s266, 4
          %s271 = int_to_ptr.hbm [resolvable:$true] %s270
          %273 = dma.vmem_to_hbm [thread:$0]  %s269, 128, %s271, %s256
        $region44: #{tpu_custom_call.1} parent=31 // pred_fallthru
          _
      $region32: #{tpu_custom_call.1} parent=5 // pred_fallthru
        _
      %p274 = scmp.le.s32.totalorder 2, %s16
      // Predicated region
      $region45: #{tpu_custom_call.1} parent=5 // pred_check
        %p275 = pneg %p274
      $region46: #{tpu_custom_call.1} parent=5 // pred_check_branch
        %277 = sbr.rel (%p275) target = $region48
      $region47: #{tpu_custom_call.1} parent=5 // pred_region
        %s278 = ssub.s32 %s16, 2
        // Predicated region
        $region49: #{tpu_custom_call.1} parent=47 // pred_check
          %p279 = pneg %p113
        $region50: #{tpu_custom_call.1} parent=47 // pred_check_branch
          %281 = sbr.rel (%p279) target = $region52
        $region51: #{tpu_custom_call.1} parent=47 // pred_region
          %s282 = sand.u32 %s98, 1
          %s283 = scalar_lea.sflag [#allocation4], %s282
          %s284 = sand.u32 %s98, 1
          %s285 = smul.addr %s284, 8
          %s286 = scalar_lea.vmem [#allocation7], %s285
          %288 = dma.done %s283, 128
        $region52: #{tpu_custom_call.1} parent=47 // pred_fallthru
          _
      $region48: #{tpu_custom_call.1} parent=5 // pred_fallthru
        _
    $region6: #{tpu_custom_call.1} parent=1 // loop_footer
      %s20 = sadd.s32 1, %s16
    $region7: #{tpu_custom_call.1} parent=1 // loop_footer_branch
      %15 = sbr.rel target = $region3
    $region8: #{tpu_custom_call.1} parent=1 // loop_exit
      _
    %289 = vsyncpa [#allocation3], 1
    %s290 = scalar_lea.sflag [#allocation3], 1
    %291 = vsyncpa %s290, 1
    %292 = vsyncpa [#allocation6], 1
    %293 = vsyncpa [#allocation4], 1
    %s294 = scalar_lea.sflag [#allocation4], 1
    %295 = vsyncpa %s294, 1

</llo_original>
